<compile_context>
chip_gen: v5e
topology: v5e:2x2
jax: 0.10.0
libtpu: 0.0.40
codegen_flags: <defaults>
</compile_context>

<pallas_src>
import jax
import jax.numpy as jnp
import numpy as np
from jax.experimental import pallas as pl
from jax.experimental.pallas import tpu as pltpu

PAD_TOKEN_ID = 1  # RoBERTa / XLM-R <pad> id


def _round_up(x, m):
    return ((x + m - 1) // m) * m


def _choose_batch_tile(B, L_pad):
    """Pick a batch tile (multiple of 8) that keeps the double-buffered
    working set well under every generation's scoped-VMEM default."""
    # Per batch row resident in VMEM: 5 seq-wide int32 arrays (token_ids,
    # off_s, off_e, input_ids, attn) + packed scalars (3) + pos output (2),
    # double-buffered by the pipeline.
    row_bytes = 2 * (5 * L_pad * 4 + 5 * 4)
    budget = 8 * 1024 * 1024  # conservative; v5e scoped default is 16 MiB
    tb = (budget // row_bytes) // 8 * 8
    tb = max(8, min(1024, tb))
    tb = min(tb, _round_up(B, 8))
    return int(tb)


def _encode_kernel(max_input_length):
    def kernel(token_ids_ref, scal_ref, off_s_ref, off_e_ref,
               input_ids_ref, attn_ref, pos_ref):
        TB, L = token_ids_ref.shape
        pos = jax.lax.broadcasted_iota(jnp.int32, (TB, L), 1)

        scal = scal_ref[...]                       # [TB, 3] packed scalars
        lens = scal[:, 0:1]                        # [TB, 1]
        sidx = scal[:, 1:2]                        # [TB, 1]
        eidx = scal[:, 2:3]                        # [TB, 1]

        valid = pos < lens                         # [TB, L] bool

        # padding="max_length": real tokens kept, rest padded with <pad>.
        # (attention mask stored first: v5e has a single vector-store slot.)
        attn_ref[...] = valid.astype(jnp.int32)
        input_ids_ref[...] = jnp.where(valid, token_ids_ref[...],
                                       jnp.int32(PAD_TOKEN_ID))

        # char_to_token: unique token whose [off_s, off_e) span contains the
        # char index; fall back to max_input_length if none (HF returns None).
        off_s = off_s_ref[...]                     # [TB, L]
        off_e = off_e_ref[...]                     # [TB, L]

        hit_s = valid & (off_s <= sidx) & (sidx < off_e)
        hit_e = valid & (off_s <= eidx) & (eidx < off_e)

        sentinel = jnp.int32(max_input_length)
        s_min = jnp.min(jnp.where(hit_s, pos, sentinel), axis=-1, keepdims=True)
        e_min = jnp.min(jnp.where(hit_e, pos, sentinel), axis=-1, keepdims=True)

        # merged (TB, 2) positions output: col 0 = start, col 1 = end.
        pos_ref[...] = jnp.concatenate([s_min, e_min], axis=-1)

    return kernel


def roberta_encode_feature(token_ids, lens, off_start, off_end,
                           start_idx, end_idx, max_input_length):
    """Pallas wrapper mirroring Roberta_Encode_Feature.forward (answers given)."""
    token_ids = jnp.asarray(token_ids, jnp.int32)
    off_start = jnp.asarray(off_start, jnp.int32)
    off_end = jnp.asarray(off_end, jnp.int32)
    lens = jnp.asarray(lens, jnp.int32).reshape(-1, 1)
    start_idx = jnp.asarray(start_idx, jnp.int32).reshape(-1, 1)
    end_idx = jnp.asarray(end_idx, jnp.int32).reshape(-1, 1)

    B, L = token_ids.shape
    # Lane-dense sequence axis: pad L up to a multiple of 128. Padded tokens
    # have lens-mask False and (0, 0) offsets, so they never match anything.
    L_pad = _round_up(max(L, 128), 128)
    TB = _choose_batch_tile(B, L_pad)
    B_pad = _round_up(B, TB)

    def pad2(x, rows, cols):
        return jnp.pad(x, ((0, rows - x.shape[0]), (0, cols - x.shape[1])))

    tok_p = pad2(token_ids, B_pad, L_pad)
    off_s_p = pad2(off_start, B_pad, L_pad)
    off_e_p = pad2(off_end, B_pad, L_pad)
    # Pack the three per-row scalars into one (B_pad, 3) array -> one small
    # DMA per grid step instead of three.
    scal_p = pad2(jnp.concatenate([lens, start_idx, end_idx], axis=-1),
                  B_pad, 3)

    seq_spec = pl.BlockSpec((TB, L_pad), lambda b: (b, 0))
    scal_spec = pl.BlockSpec((TB, 3), lambda b: (b, 0))
    pos_spec = pl.BlockSpec((TB, 2), lambda b: (b, 0))

    input_ids_p, attn_p, pos_p = pl.pallas_call(
        _encode_kernel(max_input_length),
        grid=(B_pad // TB,),
        in_specs=[seq_spec, scal_spec, seq_spec, seq_spec],
        out_specs=(seq_spec, seq_spec, pos_spec),
        out_shape=(
            jax.ShapeDtypeStruct((B_pad, L_pad), jnp.int32),   # input_ids
            jax.ShapeDtypeStruct((B_pad, L_pad), jnp.int32),   # attention_mask
            jax.ShapeDtypeStruct((B_pad, 2), jnp.int32),       # start/end pos
        ),
        # token_ids is dead after the call -> reuse its HBM buffer for input_ids.
        input_output_aliases={0: 0},
        compiler_params=pltpu.CompilerParams(
            dimension_semantics=("parallel",),   # megacore shard on v7x
            vmem_limit_bytes=32 * 1024 * 1024,
        ),
    )(tok_p, scal_p, off_s_p, off_e_p)

    return {
        "input_ids": input_ids_p[:B, :L],
        "attention_mask": attn_p[:B, :L],
        "start_positions": pos_p[:B, 0],
        "end_positions": pos_p[:B, 1],
    }


def _reference(token_ids, lens, off_s, off_e, sidx, eidx, max_input_length):
    """Pure-JAX reference for correctness checking."""
    B, L = token_ids.shape
    pos = jnp.arange(L, dtype=jnp.int32)[None, :]
    lens = lens.reshape(-1, 1)
    sidx = sidx.reshape(-1, 1)
    eidx = eidx.reshape(-1, 1)
    valid = pos < lens
    input_ids = jnp.where(valid, token_ids, PAD_TOKEN_ID)
    attn = valid.astype(jnp.int32)
    hit_s = valid & (off_s <= sidx) & (sidx < off_e)
    hit_e = valid & (off_s <= eidx) & (eidx < off_e)
    sp = jnp.min(jnp.where(hit_s, pos, max_input_length), axis=-1)
    ep = jnp.min(jnp.where(hit_e, pos, max_input_length), axis=-1)
    return input_ids, attn, sp, ep


if __name__ == "__main__":
    # TODO(synk): XLMRobertaTokenizerFast string tokenization has no Pallas
    # equivalent; we synthesize token ids and char offset maps instead.
    key = jax.random.PRNGKey(0)
    B = 2
    max_input_length = 128  # lane-dense (multiple of 128) per perf guidance

    k_tok, _ = jax.random.split(key)
    token_ids = jax.random.randint(k_tok, (B, max_input_length), 3, 250000,
                                   dtype=jnp.int32)
    lens = jnp.array([[12], [9]], dtype=jnp.int32)

    # Synthetic offset_mapping: token t covers chars [4*t, 4*t + 4).
    pos = jnp.arange(max_input_length, dtype=jnp.int32)[None, :].repeat(B, axis=0)
    off_start = 4 * pos
    off_end = 4 * pos + 4

    # One in-range answer span and one out-of-range char (exercises the
    # "char_to_token returned None -> max_input_length" fallback).
    start_idx = jnp.array([5, 2], dtype=jnp.int32)      # -> tokens 1, 0
    end_idx = jnp.array([18, 1000], dtype=jnp.int32)    # -> token 4, fallback

    # Reference computed BEFORE the kernel call (token_ids may be aliased).
    ref_ids, ref_attn, ref_sp, ref_ep = _reference(
        token_ids, lens, off_start, off_end, start_idx, end_idx,
        max_input_length)
    ref_ids, ref_attn, ref_sp, ref_ep = jax.device_get(
        (ref_ids, ref_attn, ref_sp, ref_ep))

    encodings = roberta_encode_feature(token_ids, lens, off_start, off_end,
                                       start_idx, end_idx, max_input_length)
    jax.block_until_ready(encodings)

    # correctness checks against the pure-JAX reference
    np.testing.assert_array_equal(np.asarray(encodings["input_ids"]), ref_ids)
    np.testing.assert_array_equal(np.asarray(encodings["attention_mask"]), ref_attn)
    np.testing.assert_array_equal(np.asarray(encodings["start_positions"]), ref_sp)
    np.testing.assert_array_equal(np.asarray(encodings["end_positions"]), ref_ep)

    # light semantic sanity checks
    assert encodings["input_ids"].shape == (B, max_input_length)
    assert encodings["attention_mask"].shape == (B, max_input_length)
    assert int(encodings["attention_mask"][0].sum()) == 12
    assert int(encodings["attention_mask"][1].sum()) == 9
    assert int(encodings["input_ids"][1, -1]) == PAD_TOKEN_ID
    assert int(encodings["start_positions"][0]) == 1
    assert int(encodings["end_positions"][0]) == 4
    assert int(encodings["start_positions"][1]) == 0
    assert int(encodings["end_positions"][1]) == max_input_length  # None fallback

    print("KERNEL_OK")
</pallas_src>

<mosaic_0001>
module attributes {stable_mosaic.version = 11 : i64} {
  func.func @kernel(%arg0: i32, %arg1: memref<8x128xi32, #tpu.memory_space<vmem>>, %arg2: memref<8x3xi32, #tpu.memory_space<vmem>>, %arg3: memref<8x128xi32, #tpu.memory_space<vmem>>, %arg4: memref<8x128xi32, #tpu.memory_space<vmem>>, %arg5: memref<8x128xi32, #tpu.memory_space<vmem>>, %arg6: memref<8x128xi32, #tpu.memory_space<vmem>>, %arg7: memref<8x2xi32, #tpu.memory_space<vmem>>) attributes {dimension_semantics = [#tpu.dimension_semantics<parallel>], iteration_bounds = array<i64: 1>, scalar_prefetch = 0 : i64, scratch_operands = 0 : i64, tpu.core_type = #tpu.core_type<tc>, window_params = [{transform_indices = @transform_0, window_bounds = array<i64: 8, 128>}, {transform_indices = @transform_1, window_bounds = array<i64: 8, 3>}, {transform_indices = @transform_2, window_bounds = array<i64: 8, 128>}, {transform_indices = @transform_3, window_bounds = array<i64: 8, 128>}, {transform_indices = @transform_4, window_bounds = array<i64: 8, 128>}, {transform_indices = @transform_5, window_bounds = array<i64: 8, 128>}, {transform_indices = @transform_6, window_bounds = array<i64: 8, 2>}]} {
    %0 = tpu.iota {dimensions = array<i32: 1>} : vector<8x128xi32>
    %c0 = arith.constant 0 : index
    %c0_0 = arith.constant 0 : index
    %1 = vector.load %arg2[%c0, %c0_0] : memref<8x3xi32, #tpu.memory_space<vmem>>, vector<8x3xi32>
    %2 = vector.extract_strided_slice %1 {offsets = [0, 0], sizes = [8, 1], strides = [1, 1]} : vector<8x3xi32> to vector<8x1xi32>
    %3 = vector.extract_strided_slice %1 {offsets = [0, 1], sizes = [8, 1], strides = [1, 1]} : vector<8x3xi32> to vector<8x1xi32>
    %4 = vector.extract_strided_slice %1 {offsets = [0, 2], sizes = [8, 1], strides = [1, 1]} : vector<8x3xi32> to vector<8x1xi32>
    %5 = vector.broadcast %2 : vector<8x1xi32> to vector<8x128xi32>
    %6 = arith.cmpi slt, %0, %5 : vector<8x128xi32>
    %7 = arith.extui %6 : vector<8x128xi1> to vector<8x128xi32>
    %c0_1 = arith.constant 0 : index
    %c0_2 = arith.constant 0 : index
    %8 = vector.load %arg6[%c0_1, %c0_2] : memref<8x128xi32, #tpu.memory_space<vmem>>, vector<8x128xi32>
    tpu.vector_store %arg6[%c0_1, %c0_2], %7 {strides = array<i32>} : memref<8x128xi32, #tpu.memory_space<vmem>>, vector<8x128xi32>,
    %c0_3 = arith.constant 0 : index
    %c0_4 = arith.constant 0 : index
    %9 = vector.load %arg1[%c0_3, %c0_4] : memref<8x128xi32, #tpu.memory_space<vmem>>, vector<8x128xi32>
    %c1_i32 = arith.constant 1 : i32
    %10 = vector.broadcast %c1_i32 : i32 to vector<8x128xi32>
    %11 = arith.select %6, %9, %10 : vector<8x128xi1>, vector<8x128xi32>
    %c0_5 = arith.constant 0 : index
    %c0_6 = arith.constant 0 : index
    %12 = vector.load %arg5[%c0_5, %c0_6] : memref<8x128xi32, #tpu.memory_space<vmem>>, vector<8x128xi32>
    tpu.vector_store %arg5[%c0_5, %c0_6], %11 {strides = array<i32>} : memref<8x128xi32, #tpu.memory_space<vmem>>, vector<8x128xi32>,
    %c0_7 = arith.constant 0 : index
    %c0_8 = arith.constant 0 : index
    %13 = vector.load %arg3[%c0_7, %c0_8] : memref<8x128xi32, #tpu.memory_space<vmem>>, vector<8x128xi32>
    %c0_9 = arith.constant 0 : index
    %c0_10 = arith.constant 0 : index
    %14 = vector.load %arg4[%c0_9, %c0_10] : memref<8x128xi32, #tpu.memory_space<vmem>>, vector<8x128xi32>
    %15 = vector.broadcast %3 : vector<8x1xi32> to vector<8x128xi32>
    %16 = arith.cmpi sle, %13, %15 : vector<8x128xi32>
    %17 = arith.andi %6, %16 : vector<8x128xi1>
    %18 = vector.broadcast %3 : vector<8x1xi32> to vector<8x128xi32>
    %19 = arith.cmpi slt, %18, %14 : vector<8x128xi32>
    %20 = arith.andi %17, %19 : vector<8x128xi1>
    %21 = vector.broadcast %4 : vector<8x1xi32> to vector<8x128xi32>
    %22 = arith.cmpi sle, %13, %21 : vector<8x128xi32>
    %23 = arith.andi %6, %22 : vector<8x128xi1>
    %24 = vector.broadcast %4 : vector<8x1xi32> to vector<8x128xi32>
    %25 = arith.cmpi slt, %24, %14 : vector<8x128xi32>
    %26 = arith.andi %23, %25 : vector<8x128xi1>
    %c128_i32 = arith.constant 128 : i32
    %27 = vector.broadcast %c128_i32 : i32 to vector<8x128xi32>
    %28 = arith.select %20, %0, %27 : vector<8x128xi1>, vector<8x128xi32>
    %cst = arith.constant dense<2147483647> : vector<8xi32>
    %29 = vector.multi_reduction <minsi>, %28, %cst [1] : vector<8x128xi32> to vector<8xi32>
    %30 = vector.shape_cast %29 : vector<8xi32> to vector<8x1xi32>
    %c128_i32_11 = arith.constant 128 : i32
    %31 = vector.broadcast %c128_i32_11 : i32 to vector<8x128xi32>
    %32 = arith.select %26, %0, %31 : vector<8x128xi1>, vector<8x128xi32>
    %cst_12 = arith.constant dense<2147483647> : vector<8xi32>
    %33 = vector.multi_reduction <minsi>, %32, %cst_12 [1] : vector<8x128xi32> to vector<8xi32>
    %34 = vector.shape_cast %33 : vector<8xi32> to vector<8x1xi32>
    %35 = tpu.concatenate %30, %34 in 1 : vector<8x1xi32>, vector<8x1xi32> -> vector<8x2xi32>
    %c0_13 = arith.constant 0 : index
    %c0_14 = arith.constant 0 : index
    %36 = vector.load %arg7[%c0_13, %c0_14] : memref<8x2xi32, #tpu.memory_space<vmem>>, vector<8x2xi32>
    tpu.vector_store %arg7[%c0_13, %c0_14], %35 {strides = array<i32>} : memref<8x2xi32, #tpu.memory_space<vmem>>, vector<8x2xi32>,
    return
  }
  func.func @transform_0(%arg0: i32) -> (i32, i32) {
    %c0_i32 = arith.constant 0 : i32
    %c0_i32_0 = arith.constant 0 : i32
    return %arg0, %c0_i32 : i32, i32
  }
  func.func @transform_1(%arg0: i32) -> (i32, i32) {
    %c0_i32 = arith.constant 0 : i32
    %c0_i32_0 = arith.constant 0 : i32
    return %arg0, %c0_i32 : i32, i32
  }
  func.func @transform_2(%arg0: i32) -> (i32, i32) {
    %c0_i32 = arith.constant 0 : i32
    %c0_i32_0 = arith.constant 0 : i32
    return %arg0, %c0_i32 : i32, i32
  }
  func.func @transform_3(%arg0: i32) -> (i32, i32) {
    %c0_i32 = arith.constant 0 : i32
    %c0_i32_0 = arith.constant 0 : i32
    return %arg0, %c0_i32 : i32, i32
  }
  func.func @transform_4(%arg0: i32) -> (i32, i32) {
    %c0_i32 = arith.constant 0 : i32
    %c0_i32_0 = arith.constant 0 : i32
    return %arg0, %c0_i32 : i32, i32
  }
  func.func @transform_5(%arg0: i32) -> (i32, i32) {
    %c0_i32 = arith.constant 0 : i32
    %c0_i32_0 = arith.constant 0 : i32
    return %arg0, %c0_i32 : i32, i32
  }
  func.func @transform_6(%arg0: i32) -> (i32, i32) {
    %c0_i32 = arith.constant 0 : i32
    %c0_i32_0 = arith.constant 0 : i32
    return %arg0, %c0_i32 : i32, i32
  }
}

</mosaic_0001>

<llo_original>
// kernel: tpu_custom_call.1
$region0: #{tpu_custom_call.1}
  #allocation0 [shape = 'u32[]', space=smem, size = 0x4, offset = 0x4, fixed_abs, tag = 'smem constant byte address 0x4 - core index']
  #allocation1 [shape = 'u32[72,128]{1,0:T(1,128)}', space=vmem, size = 0x9000, scoped, tag = 'internal scratch']
  %s0 = inlined_call_operand.vmem [shape: s32[8,128], index: 0, kind: input, shape index: {}, may-alias: {0,4}]
  %s1 = inlined_call_operand.vmem [shape: s32[8,3], index: 1, kind: input, shape index: {}]
  %s2 = inlined_call_operand.vmem [shape: s32[8,128], index: 2, kind: input, shape index: {}]
  %s3 = inlined_call_operand.vmem [shape: s32[8,128], index: 3, kind: input, shape index: {}]
  %s4 = inlined_call_operand.vmem [shape: s32[8,128], index: 4, kind: output, shape index: {0}, may-alias: {0,4}]
  %s5 = inlined_call_operand.hbm [shape: s32[8,128], index: 5, kind: output, shape index: {1}]
  %s6 = inlined_call_operand.vmem [shape: s32[8,2], index: 6, kind: output, shape index: {2}]
  %7 = xla_tuple %s4, %s5, %s6
  %s8 = sld [smem:[#allocation0]]
  $region42: #{tpu_custom_call.1} parent=0
    _
  %s10 = ssub.s32 1, %s8
  %s11 = scalar_select 0, %s10, %s8
  $region1: #{tpu_custom_call.1} parent=0
    #allocation2 [shape = 'u8[4096]{0}', space=vmem, size = 0x1000, scoped, tag = 'output window, operand 1, single buffered']
    #allocation3 [shape = 's32[1]{0}', space=sflag, size = 0x4, scoped, tag = 'scoped memory for tpu_custom_call.1']
    %12 = vsyncpa [#allocation3], 0
    // Predicated region
    $region2: #{tpu_custom_call.1} parent=1 // pred_check
      _
    $region3: #{tpu_custom_call.1} parent=1 // pred_check_branch
      %14 = sbr.rel (0) target = $region5
    $region4: #{tpu_custom_call.1} parent=1 // pred_region
      _
    $region5: #{tpu_custom_call.1} parent=1 // pred_fallthru
      _
    // Predicated region
    $region6: #{tpu_custom_call.1} parent=1 // pred_check
      _
    $region7: #{tpu_custom_call.1} parent=1 // pred_check_branch
      %16 = sbr.rel (0) target = $region9
    $region8: #{tpu_custom_call.1} parent=1 // pred_region
      _
    $region9: #{tpu_custom_call.1} parent=1 // pred_fallthru
      _
    // Predicated region
    $region10: #{tpu_custom_call.1} parent=1 // pred_check
      _
    $region11: #{tpu_custom_call.1} parent=1 // pred_check_branch
      %18 = sbr.rel (0) target = $region13
    $region12: #{tpu_custom_call.1} parent=1 // pred_region
      _
    $region13: #{tpu_custom_call.1} parent=1 // pred_fallthru
      _
    // Predicated region
    $region14: #{tpu_custom_call.1} parent=1 // pred_check
      _
    $region15: #{tpu_custom_call.1} parent=1 // pred_check_branch
      %20 = sbr.rel (0) target = $region17
    $region16: #{tpu_custom_call.1} parent=1 // pred_region
      _
    $region17: #{tpu_custom_call.1} parent=1 // pred_fallthru
      _
    %v21 = vlaneseq
    %v22 = vand.u32 %v21, 127
    %v23 = vld [vmem:[%s1] sm:$0xff]
    %24 = vset.pattern.permute.xlu0 0
    %25 = vperm.xlu0 %24, %v23
    %v26 = vpop.permute.xlu0 %25
    %vm27 = vcmp.lt.s32.totalorder %v22, %v26
    %v28 = vsel %vm27, 1, 0
    %29 = vst [vmem:[#allocation2] sm:$0xff] %v28
    %v30 = vld [vmem:[%s0] sm:$0xff]
    %v31 = vsel %vm27, %v30, 1
    %32 = vst [vmem:[%s4] sm:$0xff] %v31
    %v33 = vld [vmem:[%s2] sm:$0xff]
    %v34 = vld [vmem:[%s3] sm:$0xff]
    %35 = vset.pattern.permute.xlu0 1
    %36 = vperm.xlu0 %35, %v23
    %v37 = vpop.permute.xlu0 %36
    %vm38 = vcmp.le.s32.totalorder %v33, %v37
    %vm39 = vmand %vm27, %vm38
    %vm40 = vcmp.lt.s32.totalorder %v37, %v34
    %vm41 = vmand %vm39, %vm40
    %42 = vset.pattern.permute.xlu0 2
    %43 = vperm.xlu0 %42, %v23
    %v44 = vpop.permute.xlu0 %43
    %vm45 = vcmp.le.s32.totalorder %v33, %v44
    %vm46 = vmand %vm27, %vm45
    %vm47 = vcmp.lt.s32.totalorder %v44, %v34
    %vm48 = vmand %vm46, %vm47
    %v49 = vsel %vm41, %v22, 128
    %v50 = vand.u32 %v49, 65535
    %v51 = vshra.s32 %v49, 16
    %v52 = vcvt.s32.f32 %v50
    %v53 = vcvt.s32.f32 %v51
    %54 = vmin.xlane.f32.xlu0 %v53
    %v55 = vpop.xlane.xlu0 %54
    %vm56 = vcmp.eq.f32.partialorder %v53, %v55
    %v57 = vsel %vm56, %v52, inf
    %58 = vmin.xlane.f32.xlu0 %v57
    %v59 = vpop.xlane.xlu0 %58
    %v60 = vcvt.f32.s32 %v59
    %v61 = vcvt.f32.s32 %v55
    %v62 = vshll.u32 %v61, 16
    %v63 = vadd.s32 %v62, %v60
    %v64 = vsel %vm48, %v22, 128
    %v65 = vand.u32 %v64, 65535
    %v66 = vshra.s32 %v64, 16
    %v67 = vcvt.s32.f32 %v65
    %v68 = vcvt.s32.f32 %v66
    %69 = vmin.xlane.f32.xlu0 %v68
    %v70 = vpop.xlane.xlu0 %69
    %vm71 = vcmp.eq.f32.partialorder %v68, %v70
    %v72 = vsel %vm71, %v67, inf
    %73 = vmin.xlane.f32.xlu0 %v72
    %v74 = vpop.xlane.xlu0 %73
    %v75 = vcvt.f32.s32 %v74
    %v76 = vcvt.f32.s32 %v70
    %v77 = vshll.u32 %v76, 16
    %v78 = vadd.s32 %v77, %v75
    %vm79 = vcmask 7168
    %v80 = vsel %vm79, %v63, %v78
    %vm81 = vcmask 15360
    %82 = vst.msk [vmem:[%s6] sm:$0xff] %vm81, %v80
    // Predicated region
    $region18: #{tpu_custom_call.1} parent=1 // pred_check
      _
    $region19: #{tpu_custom_call.1} parent=1 // pred_check_branch
      %84 = sbr.rel (0) target = $region21
    $region20: #{tpu_custom_call.1} parent=1 // pred_region
      _
    $region21: #{tpu_custom_call.1} parent=1 // pred_fallthru
      _
    // Predicated region
    $region22: #{tpu_custom_call.1} parent=1 // pred_check
      _
    $region23: #{tpu_custom_call.1} parent=1 // pred_check_branch
      %86 = sbr.rel (0) target = $region25
    $region24: #{tpu_custom_call.1} parent=1 // pred_region
      %88 = vsyncadd [#allocation3], 0
      %s90 = sshll.u32 [#allocation2], 4
      %s91 = int_to_ptr.vmem [resolvable:$true] %s90
      %s92 = sshll.u32 %s5, 4
      %s93 = int_to_ptr.hbm [resolvable:$true] %s92
      %95 = dma.vmem_to_hbm [thread:$0]  %s91, 128, %s93, [#allocation3]
    $region25: #{tpu_custom_call.1} parent=1 // pred_fallthru
      _
    // Predicated region
    $region26: #{tpu_custom_call.1} parent=1 // pred_check
      _
    $region27: #{tpu_custom_call.1} parent=1 // pred_check_branch
      %97 = sbr.rel (0) target = $region29
    $region28: #{tpu_custom_call.1} parent=1 // pred_region
      _
    $region29: #{tpu_custom_call.1} parent=1 // pred_fallthru
      _
    // Predicated region
    $region30: #{tpu_custom_call.1} parent=1 // pred_check
      _
    $region31: #{tpu_custom_call.1} parent=1 // pred_check_branch
      %99 = sbr.rel (0) target = $region33
    $region32: #{tpu_custom_call.1} parent=1 // pred_region
      _
    $region33: #{tpu_custom_call.1} parent=1 // pred_fallthru
      _
    // Predicated region
    $region34: #{tpu_custom_call.1} parent=1 // pred_check
      _
    $region35: #{tpu_custom_call.1} parent=1 // pred_check_branch
      %101 = sbr.rel (0) target = $region37
    $region36: #{tpu_custom_call.1} parent=1 // pred_region
      %103 = dma.done [#allocation3], 128
    $region37: #{tpu_custom_call.1} parent=1 // pred_fallthru
      _
    // Predicated region
    $region38: #{tpu_custom_call.1} parent=1 // pred_check
      _
    $region39: #{tpu_custom_call.1} parent=1 // pred_check_branch
      %105 = sbr.rel (0) target = $region41
    $region40: #{tpu_custom_call.1} parent=1 // pred_region
      _
    $region41: #{tpu_custom_call.1} parent=1 // pred_fallthru
      _
    %106 = vsyncpa [#allocation3], 1

</llo_original>
